<compile_context>
chip_gen: v7x
topology: tpu7x:2x2x1
jax: 0.10.0
libtpu: 0.0.40
codegen_flags: <defaults>
</compile_context>

<pallas_src>
import jax
import jax.numpy as jnp
from jax.experimental import pallas as pl
from jax.experimental.pallas import tpu as pltpu

LANE = 128          # lane width (last dim alignment)
BF16_SUBLANE = 16   # sublane packing granularity used for the batch tile


def _round_up(n, m):
    return ((n + m - 1) // m) * m


def dqn_kernel(x_ref,
               w1_ref, b1_ref,
               w2_ref, b2_ref,
               w3_ref, b3_ref,
               w4_ref, b4_ref,
               o_ref):
    # Input arrives f32 [tile_b, state_dim]; cast to bf16 in-kernel (VPU pack).
    x = x_ref[...].astype(jnp.bfloat16)
    # Layer 1: Linear(state_dim, 256) + ReLU  (bf16 MXU, f32 accumulate, unpadded K)
    h = jnp.dot(x, w1_ref[...], preferred_element_type=jnp.float32)
    h = jnp.maximum(h + b1_ref[...], 0.0).astype(jnp.bfloat16)
    # Layer 2: Linear(256, 256) + ReLU   (exactly fills the 256x256 MXU tile)
    h = jnp.dot(h, w2_ref[...], preferred_element_type=jnp.float32)
    h = jnp.maximum(h + b2_ref[...], 0.0).astype(jnp.bfloat16)
    # Layer 3: Linear(256, 128) + ReLU
    h = jnp.dot(h, w3_ref[...], preferred_element_type=jnp.float32)
    h = jnp.maximum(h + b3_ref[...], 0.0).astype(jnp.bfloat16)
    # Layer 4: Linear(128, action_dim padded to 128)  (padded cols/bias are 0)
    o = jnp.dot(h, w4_ref[...], preferred_element_type=jnp.float32)
    o_ref[...] = (o + b4_ref[...]).astype(o_ref.dtype)


def init_dqn_params(key, state_dim, action_dim):
    """Mirrors nn.Linear init: U(-1/sqrt(fan_in), 1/sqrt(fan_in)). W is [in, out]."""
    dims = [(state_dim, 256), (256, 256), (256, 128), (128, action_dim)]
    params = []
    for (fan_in, fan_out) in dims:
        key, kw, kb = jax.random.split(key, 3)
        bound = 1.0 / jnp.sqrt(fan_in)
        w = jax.random.uniform(kw, (fan_in, fan_out), jnp.float32, -bound, bound)
        b = jax.random.uniform(kb, (fan_out,), jnp.float32, -bound, bound)
        params.append((w, b))
    return params


def pack_dqn_params(params):
    """One-time prep: keep K (fan_in) unpadded, zero-pad fan_out to a multiple
    of 128 (only the final action_dim layer actually changes), cast weights to
    bf16. Biases stay f32 (added to the f32 accumulator)."""
    packed = []
    prev_out_p = None
    for idx, (w, b) in enumerate(params):
        fan_in, fan_out = w.shape
        in_p = fan_in if idx == 0 else prev_out_p   # match previous padded width
        out_p = _round_up(fan_out, LANE)
        w_p = jnp.zeros((in_p, out_p), jnp.float32).at[:fan_in, :fan_out].set(w)
        b_p = jnp.zeros((1, out_p), jnp.float32).at[0, :fan_out].set(b)
        packed.append((w_p.astype(jnp.bfloat16), b_p))
        prev_out_p = out_p
    return packed


def dqn_forward(x, packed_params, action_dim, *,
                tile_b_max=1024, out_dtype=jnp.float32, return_padded=False):
    """Fused DQN forward. x: [B, state_dim] f32. Returns [B, action_dim] out_dtype
    (or the padded [b_pad, 128] block if return_padded=True)."""
    (w1, b1), (w2, b2), (w3, b3), (w4, b4) = packed_params
    B, state_dim = x.shape
    assert w1.shape[0] == state_dim, (w1.shape, state_dim)
    n_pad = w4.shape[1]            # padded action_dim (128)

    # Batch tile: multiple of 16, capped at tile_b_max.
    b_req = _round_up(B, BF16_SUBLANE)
    tile_b = min(tile_b_max, b_req)
    # v7x megacore: for big batches make sure the grid has >= 2 steps so the
    # "parallel" axis can be sharded across both TensorCores.
    if b_req >= 512 and pl.cdiv(b_req, tile_b) < 2:
        tile_b = _round_up(pl.cdiv(b_req, 2), BF16_SUBLANE)
    b_pad = _round_up(B, tile_b)

    # Only the batch axis ever needs padding (rows of zeros, 16-wide -> cheap);
    # skipped entirely when B is already tile-aligned.
    x_in = x if b_pad == B else jnp.pad(x, ((0, b_pad - B), (0, 0)))

    grid = (b_pad // tile_b,)

    def resident(arr):
        # Full-array block with a constant index map -> stays VMEM-resident
        # across batch-grid iterations (fetched once).
        return pl.BlockSpec(arr.shape, lambda i: (0, 0))

    out_p = pl.pallas_call(
        dqn_kernel,
        out_shape=jax.ShapeDtypeStruct((b_pad, n_pad), out_dtype),
        grid=grid,
        in_specs=[pl.BlockSpec((tile_b, state_dim), lambda i: (i, 0)),
                  resident(w1), resident(b1),
                  resident(w2), resident(b2),
                  resident(w3), resident(b3),
                  resident(w4), resident(b4)],
        out_specs=pl.BlockSpec((tile_b, n_pad), lambda i: (i, 0)),
        compiler_params=pltpu.CompilerParams(
            dimension_semantics=("parallel",),   # shard batch tiles across TCs (v7x)
            vmem_limit_bytes=16 << 20),
    )(x_in, w1, b1, w2, b2, w3, b3, w4, b4)

    if return_padded:
        # Caller keeps the lane-dense padded layout and slices [:B, :action_dim]
        # only at the very end of its pipeline (avoids an extra HBM pass here).
        return out_p
    return out_p[:B, :action_dim]


def dqn_reference_f32(x, params):
    """Plain-JAX f32 reference matching the PyTorch module exactly."""
    h = x
    for i, (w, b) in enumerate(params):
        h = h @ w + b[None, :]
        if i < len(params) - 1:
            h = jnp.maximum(h, 0.0)
    return h


def dqn_reference_bf16(x, params):
    """Reference mirroring the kernel's arithmetic (bf16 operands, f32 accum)."""
    h = x.astype(jnp.bfloat16)
    for i, (w, b) in enumerate(params):
        h = jnp.dot(h, w.astype(jnp.bfloat16),
                    preferred_element_type=jnp.float32) + b[None, :]
        if i < len(params) - 1:
            h = jnp.maximum(h, 0.0).astype(jnp.bfloat16)
    return h


if __name__ == "__main__":
    key = jax.random.PRNGKey(0)
    B, state_dim, action_dim = 8, 16, 6

    key, kx = jax.random.split(key)
    x = jax.random.normal(kx, (B, state_dim), dtype=jnp.float32)
    params = init_dqn_params(key, state_dim, action_dim)
    packed = pack_dqn_params(params)

    # --- small batch (typical RL act() call) -------------------------------
    out = dqn_forward(x, packed, action_dim)
    out = jax.block_until_ready(out)
    assert out.shape == (B, action_dim), out.shape

    ref_q = dqn_reference_bf16(x, params)      # same bf16/f32 arithmetic
    err_q = jnp.max(jnp.abs(out - ref_q))
    assert jnp.allclose(out, ref_q, atol=2e-3, rtol=2e-3), f"bf16-ref err {err_q}"

    ref = dqn_reference_f32(x, params)         # full-f32 PyTorch-equivalent
    err = jnp.max(jnp.abs(out - ref))
    assert jnp.allclose(out, ref, atol=5e-2, rtol=5e-2), f"f32-ref err {err}"

    # bf16-output fast path (downstream argmax / TD target use case).
    out_bf16 = jax.block_until_ready(
        dqn_forward(x, packed, action_dim, out_dtype=jnp.bfloat16))
    assert out_bf16.dtype == jnp.bfloat16
    assert jnp.allclose(out_bf16.astype(jnp.float32), ref_q, atol=3e-2, rtol=3e-2)

    # --- large batch (training / replay): exercises multi-step grid, megacore
    # split, and the row-padded partial last tile. ---------------------------
    key, kx2 = jax.random.split(key)
    Bl = 1000
    xl = jax.random.normal(kx2, (Bl, state_dim), dtype=jnp.float32)
    out_l = jax.block_until_ready(dqn_forward(xl, packed, action_dim))
    assert out_l.shape == (Bl, action_dim), out_l.shape
    ref_l = dqn_reference_f32(xl, params)
    err_l = jnp.max(jnp.abs(out_l - ref_l))
    assert jnp.allclose(out_l, ref_l, atol=5e-2, rtol=5e-2), f"large-B err {err_l}"

    print("KERNEL_OK")
</pallas_src>

<mosaic_0001>
module attributes {stable_mosaic.version = 11 : i64} {
  func.func @dqn_kernel(%arg0: i32, %arg1: memref<16x16xf32, #tpu.memory_space<vmem>>, %arg2: memref<16x256xbf16, #tpu.memory_space<vmem>>, %arg3: memref<1x256xf32, #tpu.memory_space<vmem>>, %arg4: memref<256x256xbf16, #tpu.memory_space<vmem>>, %arg5: memref<1x256xf32, #tpu.memory_space<vmem>>, %arg6: memref<256x128xbf16, #tpu.memory_space<vmem>>, %arg7: memref<1x128xf32, #tpu.memory_space<vmem>>, %arg8: memref<128x128xbf16, #tpu.memory_space<vmem>>, %arg9: memref<1x128xf32, #tpu.memory_space<vmem>>, %arg10: memref<16x128xf32, #tpu.memory_space<vmem>>) attributes {dimension_semantics = [#tpu.dimension_semantics<parallel>], iteration_bounds = array<i64: 1>, scalar_prefetch = 0 : i64, scratch_operands = 0 : i64, tpu.core_type = #tpu.core_type<tc>, window_params = [{transform_indices = @transform_0, window_bounds = array<i64: 16, 16>}, {pipeline_mode = #tpu.pipeline_mode<synchronous>, transform_indices = @transform_1, window_bounds = array<i64: 16, 256>}, {pipeline_mode = #tpu.pipeline_mode<synchronous>, transform_indices = @transform_2, window_bounds = array<i64: 1, 256>}, {pipeline_mode = #tpu.pipeline_mode<synchronous>, transform_indices = @transform_3, window_bounds = array<i64: 256, 256>}, {pipeline_mode = #tpu.pipeline_mode<synchronous>, transform_indices = @transform_4, window_bounds = array<i64: 1, 256>}, {pipeline_mode = #tpu.pipeline_mode<synchronous>, transform_indices = @transform_5, window_bounds = array<i64: 256, 128>}, {pipeline_mode = #tpu.pipeline_mode<synchronous>, transform_indices = @transform_6, window_bounds = array<i64: 1, 128>}, {pipeline_mode = #tpu.pipeline_mode<synchronous>, transform_indices = @transform_7, window_bounds = array<i64: 128, 128>}, {pipeline_mode = #tpu.pipeline_mode<synchronous>, transform_indices = @transform_8, window_bounds = array<i64: 1, 128>}, {transform_indices = @transform_9, window_bounds = array<i64: 16, 128>}]} {
    %c0 = arith.constant 0 : index
    %c0_0 = arith.constant 0 : index
    %0 = vector.load %arg1[%c0, %c0_0] : memref<16x16xf32, #tpu.memory_space<vmem>>, vector<16x16xf32>
    %1 = arith.truncf %0 : vector<16x16xf32> to vector<16x16xbf16>
    %c0_1 = arith.constant 0 : index
    %c0_2 = arith.constant 0 : index
    %2 = vector.load %arg2[%c0_1, %c0_2] : memref<16x256xbf16, #tpu.memory_space<vmem>>, vector<16x256xbf16>
    %cst = arith.constant dense<0.000000e+00> : vector<16x256xf32>
    %3 = tpu.matmul %1, %2, %cst {dimension_numbers = #tpu.dot_dimension_numbers<[1], [0], [0], [1], [0, 0, 1, 1], [], []>} : vector<16x16xbf16>, vector<16x256xbf16>, vector<16x256xf32> -> vector<16x256xf32>
    %c0_3 = arith.constant 0 : index
    %c0_4 = arith.constant 0 : index
    %4 = vector.load %arg3[%c0_3, %c0_4] : memref<1x256xf32, #tpu.memory_space<vmem>>, vector<1x256xf32>
    %5 = vector.broadcast %4 : vector<1x256xf32> to vector<16x256xf32>
    %6 = arith.addf %3, %5 : vector<16x256xf32>
    %cst_5 = arith.constant 0.000000e+00 : f32
    %7 = vector.broadcast %cst_5 : f32 to vector<16x256xf32>
    %8 = arith.maximumf %6, %7 : vector<16x256xf32>
    %9 = arith.truncf %8 : vector<16x256xf32> to vector<16x256xbf16>
    %c0_6 = arith.constant 0 : index
    %c0_7 = arith.constant 0 : index
    %10 = vector.load %arg4[%c0_6, %c0_7] : memref<256x256xbf16, #tpu.memory_space<vmem>>, vector<256x256xbf16>
    %cst_8 = arith.constant dense<0.000000e+00> : vector<16x256xf32>
    %11 = tpu.matmul %9, %10, %cst_8 {dimension_numbers = #tpu.dot_dimension_numbers<[1], [0], [0], [1], [0, 0, 1, 1], [], []>} : vector<16x256xbf16>, vector<256x256xbf16>, vector<16x256xf32> -> vector<16x256xf32>
    %c0_9 = arith.constant 0 : index
    %c0_10 = arith.constant 0 : index
    %12 = vector.load %arg5[%c0_9, %c0_10] : memref<1x256xf32, #tpu.memory_space<vmem>>, vector<1x256xf32>
    %13 = vector.broadcast %12 : vector<1x256xf32> to vector<16x256xf32>
    %14 = arith.addf %11, %13 : vector<16x256xf32>
    %cst_11 = arith.constant 0.000000e+00 : f32
    %15 = vector.broadcast %cst_11 : f32 to vector<16x256xf32>
    %16 = arith.maximumf %14, %15 : vector<16x256xf32>
    %17 = arith.truncf %16 : vector<16x256xf32> to vector<16x256xbf16>
    %c0_12 = arith.constant 0 : index
    %c0_13 = arith.constant 0 : index
    %18 = vector.load %arg6[%c0_12, %c0_13] : memref<256x128xbf16, #tpu.memory_space<vmem>>, vector<256x128xbf16>
    %cst_14 = arith.constant dense<0.000000e+00> : vector<16x128xf32>
    %19 = tpu.matmul %17, %18, %cst_14 {dimension_numbers = #tpu.dot_dimension_numbers<[1], [0], [0], [1], [0, 0, 1, 1], [], []>} : vector<16x256xbf16>, vector<256x128xbf16>, vector<16x128xf32> -> vector<16x128xf32>
    %c0_15 = arith.constant 0 : index
    %c0_16 = arith.constant 0 : index
    %20 = vector.load %arg7[%c0_15, %c0_16] : memref<1x128xf32, #tpu.memory_space<vmem>>, vector<1x128xf32>
    %21 = vector.broadcast %20 : vector<1x128xf32> to vector<16x128xf32>
    %22 = arith.addf %19, %21 : vector<16x128xf32>
    %cst_17 = arith.constant 0.000000e+00 : f32
    %23 = vector.broadcast %cst_17 : f32 to vector<16x128xf32>
    %24 = arith.maximumf %22, %23 : vector<16x128xf32>
    %25 = arith.truncf %24 : vector<16x128xf32> to vector<16x128xbf16>
    %c0_18 = arith.constant 0 : index
    %c0_19 = arith.constant 0 : index
    %26 = vector.load %arg8[%c0_18, %c0_19] : memref<128x128xbf16, #tpu.memory_space<vmem>>, vector<128x128xbf16>
    %cst_20 = arith.constant dense<0.000000e+00> : vector<16x128xf32>
    %27 = tpu.matmul %25, %26, %cst_20 {dimension_numbers = #tpu.dot_dimension_numbers<[1], [0], [0], [1], [0, 0, 1, 1], [], []>} : vector<16x128xbf16>, vector<128x128xbf16>, vector<16x128xf32> -> vector<16x128xf32>
    %c0_21 = arith.constant 0 : index
    %c0_22 = arith.constant 0 : index
    %28 = vector.load %arg9[%c0_21, %c0_22] : memref<1x128xf32, #tpu.memory_space<vmem>>, vector<1x128xf32>
    %29 = vector.broadcast %28 : vector<1x128xf32> to vector<16x128xf32>
    %30 = arith.addf %27, %29 : vector<16x128xf32>
    %c0_23 = arith.constant 0 : index
    %c0_24 = arith.constant 0 : index
    %31 = vector.load %arg10[%c0_23, %c0_24] : memref<16x128xf32, #tpu.memory_space<vmem>>, vector<16x128xf32>
    tpu.vector_store %arg10[%c0_23, %c0_24], %30 {strides = array<i32>} : memref<16x128xf32, #tpu.memory_space<vmem>>, vector<16x128xf32>,
    return
  }
  func.func @transform_0(%arg0: i32) -> (i32, i32) {
    %c0_i32 = arith.constant 0 : i32
    %c0_i32_0 = arith.constant 0 : i32
    return %arg0, %c0_i32 : i32, i32
  }
  func.func @transform_1(%arg0: i32) -> (i32, i32) {
    %c0_i32 = arith.constant 0 : i32
    %c0_i32_0 = arith.constant 0 : i32
    %c0_i32_1 = arith.constant 0 : i32
    return %c0_i32, %c0_i32_0 : i32, i32
  }
  func.func @transform_2(%arg0: i32) -> (i32, i32) {
    %c0_i32 = arith.constant 0 : i32
    %c0_i32_0 = arith.constant 0 : i32
    %c0_i32_1 = arith.constant 0 : i32
    return %c0_i32, %c0_i32_0 : i32, i32
  }
  func.func @transform_3(%arg0: i32) -> (i32, i32) {
    %c0_i32 = arith.constant 0 : i32
    %c0_i32_0 = arith.constant 0 : i32
    %c0_i32_1 = arith.constant 0 : i32
    return %c0_i32, %c0_i32_0 : i32, i32
  }
  func.func @transform_4(%arg0: i32) -> (i32, i32) {
    %c0_i32 = arith.constant 0 : i32
    %c0_i32_0 = arith.constant 0 : i32
    %c0_i32_1 = arith.constant 0 : i32
    return %c0_i32, %c0_i32_0 : i32, i32
  }
  func.func @transform_5(%arg0: i32) -> (i32, i32) {
    %c0_i32 = arith.constant 0 : i32
    %c0_i32_0 = arith.constant 0 : i32
    %c0_i32_1 = arith.constant 0 : i32
    return %c0_i32, %c0_i32_0 : i32, i32
  }
  func.func @transform_6(%arg0: i32) -> (i32, i32) {
    %c0_i32 = arith.constant 0 : i32
    %c0_i32_0 = arith.constant 0 : i32
    %c0_i32_1 = arith.constant 0 : i32
    return %c0_i32, %c0_i32_0 : i32, i32
  }
  func.func @transform_7(%arg0: i32) -> (i32, i32) {
    %c0_i32 = arith.constant 0 : i32
    %c0_i32_0 = arith.constant 0 : i32
    %c0_i32_1 = arith.constant 0 : i32
    return %c0_i32, %c0_i32_0 : i32, i32
  }
  func.func @transform_8(%arg0: i32) -> (i32, i32) {
    %c0_i32 = arith.constant 0 : i32
    %c0_i32_0 = arith.constant 0 : i32
    %c0_i32_1 = arith.constant 0 : i32
    return %c0_i32, %c0_i32_0 : i32, i32
  }
  func.func @transform_9(%arg0: i32) -> (i32, i32) {
    %c0_i32 = arith.constant 0 : i32
    %c0_i32_0 = arith.constant 0 : i32
    return %arg0, %c0_i32 : i32, i32
  }
}

</mosaic_0001>

<llo_original>
// kernel: tpu_custom_call.1
$region0: #{tpu_custom_call.1}
  #allocation0 [shape = 'u32[]', space=smem, size = 0x4, offset = 0x4, fixed_abs, tag = 'smem constant byte address 0x4 - core index']
  #allocation1 [shape = 'u32[144,128]{1,0:T(1,128)}', space=vmem, size = 0x12000, scoped, tag = 'internal scratch']
  %s0 = inlined_call_operand.hbm [shape: f32[16,16], index: 0, kind: input, shape index: {}]
  %s1 = inlined_call_operand.hbm [shape: bf16[16,256], index: 1, kind: input, shape index: {}]
  %s2 = inlined_call_operand.vmem [shape: f32[1,256], index: 2, kind: input, shape index: {}]
  %s3 = inlined_call_operand.hbm [shape: bf16[256,256], index: 3, kind: input, shape index: {}]
  %s4 = inlined_call_operand.vmem [shape: f32[1,256], index: 4, kind: input, shape index: {}]
  %s5 = inlined_call_operand.hbm [shape: bf16[256,128], index: 5, kind: input, shape index: {}]
  %s6 = inlined_call_operand.vmem [shape: f32[1,128], index: 6, kind: input, shape index: {}]
  %s7 = inlined_call_operand.hbm [shape: bf16[128,128], index: 7, kind: input, shape index: {}]
  %s8 = inlined_call_operand.vmem [shape: f32[1,128], index: 8, kind: input, shape index: {}]
  %s9 = inlined_call_operand.hbm [shape: f32[16,128], index: 9, kind: output, shape index: {}]
  %s10 = sld [smem:[#allocation0]]
  $region66: #{tpu_custom_call.1} parent=0
    _
  %s12 = ssub.s32 1, %s10
  %s13 = scalar_select 0, %s12, %s10
  $region1: #{tpu_custom_call.1} parent=0
    #allocation2 [shape = 'u8[8192]{0}', space=vmem, size = 0x2000, scoped, tag = 'input window, operand 0, single buffered']
    #allocation3 [shape = 's32[1]{0}', space=sflag, size = 0x4, scoped, tag = 'scoped memory for tpu_custom_call.1']
    #allocation4 [shape = 's32[1]{0}', space=sflag, size = 0x4, scoped, tag = 'scoped memory for tpu_custom_call.1']
    #allocation5 [shape = 'u8[8192]{0}', space=vmem, size = 0x2000, scoped, tag = 'input window, operand 1, single buffered']
    #allocation6 [shape = 's32[1]{0}', space=sflag, size = 0x4, scoped, tag = 'scoped memory for tpu_custom_call.1']
    #allocation7 [shape = 'u8[131072]{0}', space=vmem, size = 0x20000, scoped, tag = 'input window, operand 3, single buffered']
    #allocation8 [shape = 'u8[65536]{0}', space=vmem, size = 0x10000, scoped, tag = 'input window, operand 5, single buffered']
    #allocation9 [shape = 's32[1]{0}', space=sflag, size = 0x4, scoped, tag = 'scoped memory for tpu_custom_call.1']
    #allocation10 [shape = 'u8[32768]{0}', space=vmem, size = 0x8000, scoped, tag = 'input window, operand 7, single buffered']
    #allocation11 [shape = 'u8[8192]{0}', space=vmem, size = 0x2000, scoped, tag = 'output window, operand 0, single buffered']
    %14 = vsyncpa [#allocation3], 0
    %15 = vsyncpa [#allocation6], 0
    %16 = vsyncpa [#allocation9], 0
    %17 = vsyncpa [#allocation4], 0
    // Predicated region
    $region2: #{tpu_custom_call.1} parent=1 // pred_check
      _
    $region3: #{tpu_custom_call.1} parent=1 // pred_check_branch
      %19 = sbr.rel (0) target = $region5
    $region4: #{tpu_custom_call.1} parent=1 // pred_region
      %s21 = ssub.s32 256, 256
      %22 = vsyncadd [#allocation3], %s21
      %s23 = sshll.u32 [#allocation2], 4
      %s24 = int_to_ptr.vmem [resolvable:$true] %s23
      %29 = dma.hbm_to_vmem [thread:$0]  %s0, 256, %s24, [#allocation3], 128, 128, 8
    $region5: #{tpu_custom_call.1} parent=1 // pred_fallthru
      _
    // Predicated region
    $region6: #{tpu_custom_call.1} parent=1 // pred_check
      _
    $region7: #{tpu_custom_call.1} parent=1 // pred_check_branch
      %31 = sbr.rel (0) target = $region9
    $region8: #{tpu_custom_call.1} parent=1 // pred_region
      %s33 = ssub.s32 256, 256
      %34 = vsyncadd [#allocation6], %s33
      %s35 = sshll.u32 [#allocation5], 4
      %s36 = int_to_ptr.vmem [resolvable:$true] %s35
      %41 = dma.hbm_to_vmem [thread:$0]  %s1, 256, %s36, [#allocation6], 128, 128, 8
    $region9: #{tpu_custom_call.1} parent=1 // pred_fallthru
      _
    // Predicated region
    $region10: #{tpu_custom_call.1} parent=1 // pred_check
      _
    $region11: #{tpu_custom_call.1} parent=1 // pred_check_branch
      %43 = sbr.rel (0) target = $region13
    $region12: #{tpu_custom_call.1} parent=1 // pred_region
      _
    $region13: #{tpu_custom_call.1} parent=1 // pred_fallthru
      _
    // Predicated region
    $region14: #{tpu_custom_call.1} parent=1 // pred_check
      _
    $region15: #{tpu_custom_call.1} parent=1 // pred_check_branch
      %45 = sbr.rel (0) target = $region17
    $region16: #{tpu_custom_call.1} parent=1 // pred_region
      %s47 = ssub.s32 4096, 4096
      %48 = vsyncadd [#allocation6], %s47
      %s49 = sshll.u32 [#allocation7], 4
      %s50 = int_to_ptr.vmem [resolvable:$true] %s49
      %55 = dma.hbm_to_vmem [thread:$0]  %s3, 4096, %s50, [#allocation6], 128, 128, 8
    $region17: #{tpu_custom_call.1} parent=1 // pred_fallthru
      _
    // Predicated region
    $region18: #{tpu_custom_call.1} parent=1 // pred_check
      _
    $region19: #{tpu_custom_call.1} parent=1 // pred_check_branch
      %57 = sbr.rel (0) target = $region21
    $region20: #{tpu_custom_call.1} parent=1 // pred_region
      _
    $region21: #{tpu_custom_call.1} parent=1 // pred_fallthru
      _
    // Predicated region
    $region22: #{tpu_custom_call.1} parent=1 // pred_check
      _
    $region23: #{tpu_custom_call.1} parent=1 // pred_check_branch
      %59 = sbr.rel (0) target = $region25
    $region24: #{tpu_custom_call.1} parent=1 // pred_region
      %s61 = ssub.s32 2048, 2048
      %62 = vsyncadd [#allocation9], %s61
      %s63 = sshll.u32 [#allocation8], 4
      %s64 = int_to_ptr.vmem [resolvable:$true] %s63
      %69 = dma.hbm_to_vmem [thread:$0]  %s5, 2048, %s64, [#allocation9], 64, 64, 4
    $region25: #{tpu_custom_call.1} parent=1 // pred_fallthru
      _
    // Predicated region
    $region26: #{tpu_custom_call.1} parent=1 // pred_check
      _
    $region27: #{tpu_custom_call.1} parent=1 // pred_check_branch
      %71 = sbr.rel (0) target = $region29
    $region28: #{tpu_custom_call.1} parent=1 // pred_region
      _
    $region29: #{tpu_custom_call.1} parent=1 // pred_fallthru
      _
    // Predicated region
    $region30: #{tpu_custom_call.1} parent=1 // pred_check
      _
    $region31: #{tpu_custom_call.1} parent=1 // pred_check_branch
      %73 = sbr.rel (0) target = $region33
    $region32: #{tpu_custom_call.1} parent=1 // pred_region
      %s75 = ssub.s32 1024, 1024
      %76 = vsyncadd [#allocation9], %s75
      %s77 = sshll.u32 [#allocation10], 4
      %s78 = int_to_ptr.vmem [resolvable:$true] %s77
      %83 = dma.hbm_to_vmem [thread:$0]  %s7, 1024, %s78, [#allocation9], 64, 64, 4
    $region33: #{tpu_custom_call.1} parent=1 // pred_fallthru
      _
    // Predicated region
    $region34: #{tpu_custom_call.1} parent=1 // pred_check
      _
    $region35: #{tpu_custom_call.1} parent=1 // pred_check_branch
      %85 = sbr.rel (0) target = $region37
    $region36: #{tpu_custom_call.1} parent=1 // pred_region
      _
    $region37: #{tpu_custom_call.1} parent=1 // pred_fallthru
      _
    // Predicated region
    $region38: #{tpu_custom_call.1} parent=1 // pred_check
      _
    $region39: #{tpu_custom_call.1} parent=1 // pred_check_branch
      %87 = sbr.rel (0) target = $region41
    $region40: #{tpu_custom_call.1} parent=1 // pred_region
      %88 = dma.done [#allocation3], 256
    $region41: #{tpu_custom_call.1} parent=1 // pred_fallthru
      _
    // Predicated region
    $region42: #{tpu_custom_call.1} parent=1 // pred_check
      _
    $region43: #{tpu_custom_call.1} parent=1 // pred_check_branch
      %90 = sbr.rel (0) target = $region45
    $region44: #{tpu_custom_call.1} parent=1 // pred_region
      %91 = dma.done [#allocation6], 256
    $region45: #{tpu_custom_call.1} parent=1 // pred_fallthru
      _
    // Predicated region
    $region46: #{tpu_custom_call.1} parent=1 // pred_check
      _
    $region47: #{tpu_custom_call.1} parent=1 // pred_check_branch
      %93 = sbr.rel (0) target = $region49
    $region48: #{tpu_custom_call.1} parent=1 // pred_region
      %94 = dma.done [#allocation6], 4096
    $region49: #{tpu_custom_call.1} parent=1 // pred_fallthru
      _
    // Predicated region
    $region50: #{tpu_custom_call.1} parent=1 // pred_check
      _
    $region51: #{tpu_custom_call.1} parent=1 // pred_check_branch
      %96 = sbr.rel (0) target = $region53
    $region52: #{tpu_custom_call.1} parent=1 // pred_region
      %97 = dma.done [#allocation9], 2048
    $region53: #{tpu_custom_call.1} parent=1 // pred_fallthru
      _
    // Predicated region
    $region54: #{tpu_custom_call.1} parent=1 // pred_check
      _
    $region55: #{tpu_custom_call.1} parent=1 // pred_check_branch
      %99 = sbr.rel (0) target = $region57
    $region56: #{tpu_custom_call.1} parent=1 // pred_region
      %100 = dma.done [#allocation9], 1024
    $region57: #{tpu_custom_call.1} parent=1 // pred_fallthru
      _
    %v102 = vld [vmem:[#allocation2] sm:$0xff]
    %v103 = vld [vmem:[#allocation2 + $0x8] sm:$0xff]
    %v104 = vpack.c.bf16 %v103, %v102
    %v105 = vld [vmem:[#allocation5] sm:$0xff]
    %v106 = vld [vmem:[#allocation5 + $0x8] sm:$0xff]
    %v107 = vld [vmem:[%s2] sm:$0x3]
    %v109 = vlaneseq
    %v110 = vshrl.u32 %v109, 7
    %v111 = vsub.s32 0, %v110
    %v112 = vrot.slane %v107, %v111
    %v113 = vlaneseq
    %v114 = vshrl.u32 %v113, 7
    %v115 = vsub.s32 1, %v114
    %v116 = vrot.slane %v107, %v115
    %v121 = vunpack.c.l.b16 %v105
    %v122 = vunpack.c.h.b16 %v105
    %v123 = vunpack.c.l.b16 %v106
    %v124 = vunpack.c.h.b16 %v106
    %v125 = vpack.c.b16 %v123, %v121
    %v126 = vpack.c.b16 %v124, %v122
    %vm129 = vcmask 130048
    %v131 = vsel %vm129, %v104, 0
    %133 = vmatprep.subr.bf16.mxu0 %v126
    %134 = vmatpush1.bf16.msra.mxu0 %v125
    %135 = vmatprep.subr.bf16.mxu0 0
    %136 = vmatpush1.bf16.msra.mxu0 0
    %137 = vmatprep.subr.bf16.mxu0 0
    %138 = vmatpush1.bf16.msra.mxu0 0
    %139 = vmatprep.subr.bf16.mxu0 0
    %140 = vmatpush1.bf16.msra.mxu0 0
    %141 = vmatprep.subr.bf16.mxu0 0
    %142 = vmatpush1.bf16.msra.mxu0 0
    %143 = vmatprep.subr.bf16.mxu0 0
    %144 = vmatpush1.bf16.msra.mxu0 0
    %145 = vmatprep.subr.bf16.mxu0 0
    %146 = vmatpush1.bf16.msra.mxu0 0
    %147 = vmatprep.subr.bf16.mxu0 0
    %148 = vmatpush1.bf16.msra.mxu0 0
    %149 = vmatprep.subr.bf16.mxu0 0
    %150 = vmatpush1.bf16.msra.mxu0 0
    %151 = vmatprep.subr.bf16.mxu0 0
    %152 = vmatpush1.bf16.msra.mxu0 0
    %153 = vmatprep.subr.bf16.mxu0 0
    %154 = vmatpush1.bf16.msra.mxu0 0
    %155 = vmatprep.subr.bf16.mxu0 0
    %156 = vmatpush1.bf16.msra.mxu0 0
    %157 = vmatprep.subr.bf16.mxu0 0
    %158 = vmatpush1.bf16.msra.mxu0 0
    %159 = vmatprep.subr.bf16.mxu0 0
    %160 = vmatpush1.bf16.msra.mxu0 0
    %161 = vmatprep.subr.bf16.mxu0 0
    %162 = vmatpush1.bf16.msra.mxu0 0
    %163 = vmatprep.subr.bf16.mxu0 0
    %164 = vmatpush1.bf16.msra.mxu0 0
    %165 = vmatprep.mubr.bf16.mxu0 0
    %166 = vmatmul.mubr.bf16.gmra.mrb[0].mxu0 %v131
    %v167 = vpop.f32.mrb[0].mxu0
    %v168 = vadd.f32 %v112, %v167
    %v169 = vpop.f32.mrb[0].mxu0
    %v170 = vadd.f32 %v116, %v169
    %v171 = vpop.f32.mrb[0].mxu0
    %v172 = vadd.f32 %v112, %v171
    %v173 = vpop.f32.mrb[0].mxu0
    %v174 = vadd.f32 %v116, %v173
    %175 = vdwg.mxu0
    %v176 = vmax.f32 %v168, 0.0
    %v177 = vmax.f32 %v170, 0.0
    %v178 = vmax.f32 %v172, 0.0
    %v179 = vmax.f32 %v174, 0.0
    %v180 = vpack.c.bf16 %v178, %v176
    %v181 = vpack.c.bf16 %v179, %v177
    %v182 = vld [vmem:[#allocation7] sm:$0xff]
    %v183 = vld [vmem:[#allocation7 + $0x8] sm:$0xff]
    %v184 = vld [vmem:[#allocation7 + $0x10] sm:$0xff]
    %v185 = vld [vmem:[#allocation7 + $0x18] sm:$0xff]
    %v186 = vld [vmem:[#allocation7 + $0x20] sm:$0xff]
    %v187 = vld [vmem:[#allocation7 + $0x28] sm:$0xff]
    %v188 = vld [vmem:[#allocation7 + $0x30] sm:$0xff]
    %v189 = vld [vmem:[#allocation7 + $0x38] sm:$0xff]
    %v190 = vld [vmem:[#allocation7 + $0x40] sm:$0xff]
    %v191 = vld [vmem:[#allocation7 + $0x48] sm:$0xff]
    %v192 = vld [vmem:[#allocation7 + $0x50] sm:$0xff]
    %v193 = vld [vmem:[#allocation7 + $0x58] sm:$0xff]
    %v194 = vld [vmem:[#allocation7 + $0x60] sm:$0xff]
    %v195 = vld [vmem:[#allocation7 + $0x68] sm:$0xff]
    %v196 = vld [vmem:[#allocation7 + $0x70] sm:$0xff]
    %v197 = vld [vmem:[#allocation7 + $0x78] sm:$0xff]
    %v198 = vld [vmem:[#allocation7 + $0x80] sm:$0xff]
    %v199 = vld [vmem:[#allocation7 + $0x88] sm:$0xff]
    %v200 = vld [vmem:[#allocation7 + $0x90] sm:$0xff]
    %v201 = vld [vmem:[#allocation7 + $0x98] sm:$0xff]
    %v202 = vld [vmem:[#allocation7 + $0xa0] sm:$0xff]
    %v203 = vld [vmem:[#allocation7 + $0xa8] sm:$0xff]
    %v204 = vld [vmem:[#allocation7 + $0xb0] sm:$0xff]
    %v205 = vld [vmem:[#allocation7 + $0xb8] sm:$0xff]
    %v206 = vld [vmem:[#allocation7 + $0xc0] sm:$0xff]
    %v207 = vld [vmem:[#allocation7 + $0xc8] sm:$0xff]
    %v208 = vld [vmem:[#allocation7 + $0xd0] sm:$0xff]
    %v209 = vld [vmem:[#allocation7 + $0xd8] sm:$0xff]
    %v210 = vld [vmem:[#allocation7 + $0xe0] sm:$0xff]
    %v211 = vld [vmem:[#allocation7 + $0xe8] sm:$0xff]
    %v212 = vld [vmem:[#allocation7 + $0xf0] sm:$0xff]
    %v213 = vld [vmem:[#allocation7 + $0xf8] sm:$0xff]
    %v214 = vld [vmem:[%s4] sm:$0x3]
    %v216 = vlaneseq
    %v217 = vshrl.u32 %v216, 7
    %v218 = vsub.s32 0, %v217
    %v219 = vrot.slane %v214, %v218
    %v220 = vlaneseq
    %v221 = vshrl.u32 %v220, 7
    %v222 = vsub.s32 1, %v221
    %v223 = vrot.slane %v214, %v222
    %v258 = vunpack.c.l.b16 %v182
    %v259 = vunpack.c.h.b16 %v182
    %v260 = vunpack.c.l.b16 %v183
    %v261 = vunpack.c.h.b16 %v183
    %v262 = vunpack.c.l.b16 %v184
    %v263 = vunpack.c.h.b16 %v184
    %v264 = vunpack.c.l.b16 %v185
    %v265 = vunpack.c.h.b16 %v185
    %v266 = vunpack.c.l.b16 %v186
    %v267 = vunpack.c.h.b16 %v186
    %v268 = vunpack.c.l.b16 %v187
    %v269 = vunpack.c.h.b16 %v187
    %v270 = vunpack.c.l.b16 %v188
    %v271 = vunpack.c.h.b16 %v188
    %v272 = vunpack.c.l.b16 %v189
    %v273 = vunpack.c.h.b16 %v189
    %v274 = vunpack.c.l.b16 %v190
    %v275 = vunpack.c.h.b16 %v190
    %v276 = vunpack.c.l.b16 %v191
    %v277 = vunpack.c.h.b16 %v191
    %v278 = vunpack.c.l.b16 %v192
    %v279 = vunpack.c.h.b16 %v192
    %v280 = vunpack.c.l.b16 %v193
    %v281 = vunpack.c.h.b16 %v193
    %v282 = vunpack.c.l.b16 %v194
    %v283 = vunpack.c.h.b16 %v194
    %v284 = vunpack.c.l.b16 %v195
    %v285 = vunpack.c.h.b16 %v195
    %v286 = vunpack.c.l.b16 %v196
    %v287 = vunpack.c.h.b16 %v196
    %v288 = vunpack.c.l.b16 %v197
    %v289 = vunpack.c.h.b16 %v197
    %v290 = vunpack.c.l.b16 %v198
    %v291 = vunpack.c.h.b16 %v198
    %v292 = vunpack.c.l.b16 %v199
    %v293 = vunpack.c.h.b16 %v199
    %v294 = vunpack.c.l.b16 %v200
    %v295 = vunpack.c.h.b16 %v200
    %v296 = vunpack.c.l.b16 %v201
    %v297 = vunpack.c.h.b16 %v201
    %v298 = vunpack.c.l.b16 %v202
    %v299 = vunpack.c.h.b16 %v202
    %v300 = vunpack.c.l.b16 %v203
    %v301 = vunpack.c.h.b16 %v203
    %v302 = vunpack.c.l.b16 %v204
    %v303 = vunpack.c.h.b16 %v204
    %v304 = vunpack.c.l.b16 %v205
    %v305 = vunpack.c.h.b16 %v205
    %v306 = vunpack.c.l.b16 %v206
    %v307 = vunpack.c.h.b16 %v206
    %v308 = vunpack.c.l.b16 %v207
    %v309 = vunpack.c.h.b16 %v207
    %v310 = vunpack.c.l.b16 %v208
    %v311 = vunpack.c.h.b16 %v208
    %v312 = vunpack.c.l.b16 %v209
    %v313 = vunpack.c.h.b16 %v209
    %v314 = vunpack.c.l.b16 %v210
    %v315 = vunpack.c.h.b16 %v210
    %v316 = vunpack.c.l.b16 %v211
    %v317 = vunpack.c.h.b16 %v211
    %v318 = vunpack.c.l.b16 %v212
    %v319 = vunpack.c.h.b16 %v212
    %v320 = vunpack.c.l.b16 %v213
    %v321 = vunpack.c.h.b16 %v213
    %v322 = vpack.c.b16 %v260, %v258
    %v323 = vpack.c.b16 %v261, %v259
    %v324 = vpack.c.b16 %v264, %v262
    %v325 = vpack.c.b16 %v265, %v263
    %v326 = vpack.c.b16 %v268, %v266
    %v327 = vpack.c.b16 %v269, %v267
    %v328 = vpack.c.b16 %v272, %v270
    %v329 = vpack.c.b16 %v273, %v271
    %v330 = vpack.c.b16 %v276, %v274
    %v331 = vpack.c.b16 %v277, %v275
    %v332 = vpack.c.b16 %v280, %v278
    %v333 = vpack.c.b16 %v281, %v279
    %v334 = vpack.c.b16 %v284, %v282
    %v335 = vpack.c.b16 %v285, %v283
    %v336 = vpack.c.b16 %v288, %v286
    %v337 = vpack.c.b16 %v289, %v287
    %v338 = vpack.c.b16 %v292, %v290
    %v339 = vpack.c.b16 %v293, %v291
    %v340 = vpack.c.b16 %v296, %v294
    %v341 = vpack.c.b16 %v297, %v295
    %v342 = vpack.c.b16 %v300, %v298
    %v343 = vpack.c.b16 %v301, %v299
    %v344 = vpack.c.b16 %v304, %v302
    %v345 = vpack.c.b16 %v305, %v303
    %v346 = vpack.c.b16 %v308, %v306
    %v347 = vpack.c.b16 %v309, %v307
    %v348 = vpack.c.b16 %v312, %v310
    %v349 = vpack.c.b16 %v313, %v311
    %v350 = vpack.c.b16 %v316, %v314
    %v351 = vpack.c.b16 %v317, %v315
    %v352 = vpack.c.b16 %v320, %v318
    %v353 = vpack.c.b16 %v321, %v319
    %386 = vmatprep.subr.bf16.mxu0 %v323
    %387 = vmatpush1.bf16.msra.mxu0 %v322
    %388 = vmatprep.subr.bf16.mxu0 %v325
    %389 = vmatpush1.bf16.msra.mxu0 %v324
    %390 = vmatprep.subr.bf16.mxu0 %v327
    %391 = vmatpush1.bf16.msra.mxu0 %v326
    %392 = vmatprep.subr.bf16.mxu0 %v329
    %393 = vmatpush1.bf16.msra.mxu0 %v328
    %394 = vmatprep.subr.bf16.mxu0 %v331
    %395 = vmatpush1.bf16.msra.mxu0 %v330
    %396 = vmatprep.subr.bf16.mxu0 %v333
    %397 = vmatpush1.bf16.msra.mxu0 %v332
    %398 = vmatprep.subr.bf16.mxu0 %v335
    %399 = vmatpush1.bf16.msra.mxu0 %v334
    %400 = vmatprep.subr.bf16.mxu0 %v337
    %401 = vmatpush1.bf16.msra.mxu0 %v336
    %402 = vmatprep.subr.bf16.mxu0 %v339
    %403 = vmatpush1.bf16.msra.mxu0 %v338
    %404 = vmatprep.subr.bf16.mxu0 %v341
    %405 = vmatpush1.bf16.msra.mxu0 %v340
    %406 = vmatprep.subr.bf16.mxu0 %v343
    %407 = vmatpush1.bf16.msra.mxu0 %v342
    %408 = vmatprep.subr.bf16.mxu0 %v345
    %409 = vmatpush1.bf16.msra.mxu0 %v344
    %410 = vmatprep.subr.bf16.mxu0 %v347
    %411 = vmatpush1.bf16.msra.mxu0 %v346
    %412 = vmatprep.subr.bf16.mxu0 %v349
    %413 = vmatpush1.bf16.msra.mxu0 %v348
    %414 = vmatprep.subr.bf16.mxu0 %v351
    %415 = vmatpush1.bf16.msra.mxu0 %v350
    %416 = vmatprep.subr.bf16.mxu0 %v353
    %417 = vmatpush1.bf16.msra.mxu0 %v352
    %418 = vmatprep.mubr.bf16.mxu0 %v181
    %419 = vmatmul.mubr.bf16.gmra.mrb[0].mxu0 %v180
    %v420 = vpop.f32.mrb[0].mxu0
    %v421 = vadd.f32 %v219, %v420
    %v422 = vpop.f32.mrb[0].mxu0
    %v423 = vadd.f32 %v223, %v422
    %v424 = vpop.f32.mrb[0].mxu0
    %v425 = vadd.f32 %v219, %v424
    %v426 = vpop.f32.mrb[0].mxu0
    %v427 = vadd.f32 %v223, %v426
    %428 = vdwg.mxu0
    %v429 = vmax.f32 %v421, 0.0
    %v430 = vmax.f32 %v423, 0.0
    %v431 = vmax.f32 %v425, 0.0
    %v432 = vmax.f32 %v427, 0.0
    %v433 = vpack.c.bf16 %v431, %v429
    %v434 = vpack.c.bf16 %v432, %v430
    %v435 = vld [vmem:[#allocation8] sm:$0xf]
    %v436 = vld [vmem:[#allocation8 + $0x4] sm:$0xf]
    %v437 = vld [vmem:[#allocation8 + $0x8] sm:$0xf]
    %v438 = vld [vmem:[#allocation8 + $0xc] sm:$0xf]
    %v439 = vld [vmem:[#allocation8 + $0x10] sm:$0xf]
    %v440 = vld [vmem:[#allocation8 + $0x14] sm:$0xf]
    %v441 = vld [vmem:[#allocation8 + $0x18] sm:$0xf]
    %v442 = vld [vmem:[#allocation8 + $0x1c] sm:$0xf]
    %v443 = vld [vmem:[#allocation8 + $0x20] sm:$0xf]
    %v444 = vld [vmem:[#allocation8 + $0x24] sm:$0xf]
    %v445 = vld [vmem:[#allocation8 + $0x28] sm:$0xf]
    %v446 = vld [vmem:[#allocation8 + $0x2c] sm:$0xf]
    %v447 = vld [vmem:[#allocation8 + $0x30] sm:$0xf]
    %v448 = vld [vmem:[#allocation8 + $0x34] sm:$0xf]
    %v449 = vld [vmem:[#allocation8 + $0x38] sm:$0xf]
    %v450 = vld [vmem:[#allocation8 + $0x3c] sm:$0xf]
    %v451 = vld [vmem:[#allocation8 + $0x40] sm:$0xf]
    %v452 = vld [vmem:[#allocation8 + $0x44] sm:$0xf]
    %v453 = vld [vmem:[#allocation8 + $0x48] sm:$0xf]
    %v454 = vld [vmem:[#allocation8 + $0x4c] sm:$0xf]
    %v455 = vld [vmem:[#allocation8 + $0x50] sm:$0xf]
    %v456 = vld [vmem:[#allocation8 + $0x54] sm:$0xf]
    %v457 = vld [vmem:[#allocation8 + $0x58] sm:$0xf]
    %v458 = vld [vmem:[#allocation8 + $0x5c] sm:$0xf]
    %v459 = vld [vmem:[#allocation8 + $0x60] sm:$0xf]
    %v460 = vld [vmem:[#allocation8 + $0x64] sm:$0xf]
    %v461 = vld [vmem:[#allocation8 + $0x68] sm:$0xf]
    %v462 = vld [vmem:[#allocation8 + $0x6c] sm:$0xf]
    %v463 = vld [vmem:[#allocation8 + $0x70] sm:$0xf]
    %v464 = vld [vmem:[#allocation8 + $0x74] sm:$0xf]
    %v465 = vld [vmem:[#allocation8 + $0x78] sm:$0xf]
    %v466 = vld [vmem:[#allocation8 + $0x7c] sm:$0xf]
    %v467 = vld [vmem:[%s6] sm:$0x1]
    %v469 = vlaneseq
    %v470 = vshrl.u32 %v469, 7
    %v471 = vsub.s32 0, %v470
    %v472 = vrot.slane %v467, %v471
    %v506 = vunpack.c.l.b16 %v435
    %v507 = vunpack.c.l.b16 %v436
    %v508 = vunpack.c.l.b16 %v437
    %v509 = vunpack.c.l.b16 %v438
    %v510 = vunpack.c.l.b16 %v439
    %v511 = vunpack.c.l.b16 %v440
    %v512 = vunpack.c.l.b16 %v441
    %v513 = vunpack.c.l.b16 %v442
    %v514 = vunpack.c.l.b16 %v443
    %v515 = vunpack.c.l.b16 %v444
    %v516 = vunpack.c.l.b16 %v445
    %v517 = vunpack.c.l.b16 %v446
    %v518 = vunpack.c.l.b16 %v447
    %v519 = vunpack.c.l.b16 %v448
    %v520 = vunpack.c.l.b16 %v449
    %v521 = vunpack.c.l.b16 %v450
    %v522 = vunpack.c.l.b16 %v451
    %v523 = vunpack.c.l.b16 %v452
    %v524 = vunpack.c.l.b16 %v453
    %v525 = vunpack.c.l.b16 %v454
    %v526 = vunpack.c.l.b16 %v455
    %v527 = vunpack.c.l.b16 %v456
    %v528 = vunpack.c.l.b16 %v457
    %v529 = vunpack.c.l.b16 %v458
    %v530 = vunpack.c.l.b16 %v459
    %v531 = vunpack.c.l.b16 %v460
    %v532 = vunpack.c.l.b16 %v461
    %v533 = vunpack.c.l.b16 %v462
    %v534 = vunpack.c.l.b16 %v463
    %v535 = vunpack.c.l.b16 %v464
    %v536 = vunpack.c.l.b16 %v465
    %v537 = vunpack.c.l.b16 %v466
    %v538 = vpack.c.b16 %v507, %v506
    %v539 = vpack.c.b16 %v509, %v508
    %v540 = vpack.c.b16 %v511, %v510
    %v541 = vpack.c.b16 %v513, %v512
    %v542 = vpack.c.b16 %v515, %v514
    %v543 = vpack.c.b16 %v517, %v516
    %v544 = vpack.c.b16 %v519, %v518
    %v545 = vpack.c.b16 %v521, %v520
    %v546 = vpack.c.b16 %v523, %v522
    %v547 = vpack.c.b16 %v525, %v524
    %v548 = vpack.c.b16 %v527, %v526
    %v549 = vpack.c.b16 %v529, %v528
    %v550 = vpack.c.b16 %v531, %v530
    %v551 = vpack.c.b16 %v533, %v532
    %v552 = vpack.c.b16 %v535, %v534
    %v553 = vpack.c.b16 %v537, %v536
    %570 = vmatprep.subr.bf16.mxu0 0
    %571 = vmatpush1.bf16.msra.mxu0 %v538
    %572 = vmatprep.subr.bf16.mxu0 0
    %573 = vmatpush1.bf16.msra.mxu0 %v539
    %574 = vmatprep.subr.bf16.mxu0 0
    %575 = vmatpush1.bf16.msra.mxu0 %v540
    %576 = vmatprep.subr.bf16.mxu0 0
    %577 = vmatpush1.bf16.msra.mxu0 %v541
    %578 = vmatprep.subr.bf16.mxu0 0
    %579 = vmatpush1.bf16.msra.mxu0 %v542
    %580 = vmatprep.subr.bf16.mxu0 0
    %581 = vmatpush1.bf16.msra.mxu0 %v543
    %582 = vmatprep.subr.bf16.mxu0 0
    %583 = vmatpush1.bf16.msra.mxu0 %v544
    %584 = vmatprep.subr.bf16.mxu0 0
    %585 = vmatpush1.bf16.msra.mxu0 %v545
    %586 = vmatprep.subr.bf16.mxu0 0
    %587 = vmatpush1.bf16.msra.mxu0 %v546
    %588 = vmatprep.subr.bf16.mxu0 0
    %589 = vmatpush1.bf16.msra.mxu0 %v547
    %590 = vmatprep.subr.bf16.mxu0 0
    %591 = vmatpush1.bf16.msra.mxu0 %v548
    %592 = vmatprep.subr.bf16.mxu0 0
    %593 = vmatpush1.bf16.msra.mxu0 %v549
    %594 = vmatprep.subr.bf16.mxu0 0
    %595 = vmatpush1.bf16.msra.mxu0 %v550
    %596 = vmatprep.subr.bf16.mxu0 0
    %597 = vmatpush1.bf16.msra.mxu0 %v551
    %598 = vmatprep.subr.bf16.mxu0 0
    %599 = vmatpush1.bf16.msra.mxu0 %v552
    %600 = vmatprep.subr.bf16.mxu0 0
    %601 = vmatpush1.bf16.msra.mxu0 %v553
    %602 = vmatprep.mubr.bf16.mxu0 %v434
    %603 = vmatmul.mubr.bf16.gmra.mrb[0].mxu0 %v433
    %v604 = vpop.f32.mrb[0].mxu0
    %v605 = vadd.f32 %v472, %v604
    %v606 = vpop.f32.mrb[0].mxu0
    %v607 = vpop.f32.mrb[0].mxu0
    %v608 = vadd.f32 %v472, %v607
    %v609 = vpop.f32.mrb[0].mxu0
    %610 = vdwg.mxu0
    %v611 = vmax.f32 %v605, 0.0
    %v612 = vmax.f32 %v608, 0.0
    %v613 = vpack.c.bf16 %v612, %v611
    %v614 = vld [vmem:[#allocation10] sm:$0xf]
    %v615 = vld [vmem:[#allocation10 + $0x4] sm:$0xf]
    %v616 = vld [vmem:[#allocation10 + $0x8] sm:$0xf]
    %v617 = vld [vmem:[#allocation10 + $0xc] sm:$0xf]
    %v618 = vld [vmem:[#allocation10 + $0x10] sm:$0xf]
    %v619 = vld [vmem:[#allocation10 + $0x14] sm:$0xf]
    %v620 = vld [vmem:[#allocation10 + $0x18] sm:$0xf]
    %v621 = vld [vmem:[#allocation10 + $0x1c] sm:$0xf]
    %v622 = vld [vmem:[#allocation10 + $0x20] sm:$0xf]
    %v623 = vld [vmem:[#allocation10 + $0x24] sm:$0xf]
    %v624 = vld [vmem:[#allocation10 + $0x28] sm:$0xf]
    %v625 = vld [vmem:[#allocation10 + $0x2c] sm:$0xf]
    %v626 = vld [vmem:[#allocation10 + $0x30] sm:$0xf]
    %v627 = vld [vmem:[#allocation10 + $0x34] sm:$0xf]
    %v628 = vld [vmem:[#allocation10 + $0x38] sm:$0xf]
    %v629 = vld [vmem:[#allocation10 + $0x3c] sm:$0xf]
    %v630 = vld [vmem:[%s8] sm:$0x1]
    %v632 = vlaneseq
    %v633 = vshrl.u32 %v632, 7
    %v634 = vsub.s32 0, %v633
    %v635 = vrot.slane %v630, %v634
    %v653 = vunpack.c.l.b16 %v614
    %v654 = vunpack.c.l.b16 %v615
    %v655 = vunpack.c.l.b16 %v616
    %v656 = vunpack.c.l.b16 %v617
    %v657 = vunpack.c.l.b16 %v618
    %v658 = vunpack.c.l.b16 %v619
    %v659 = vunpack.c.l.b16 %v620
    %v660 = vunpack.c.l.b16 %v621
    %v661 = vunpack.c.l.b16 %v622
    %v662 = vunpack.c.l.b16 %v623
    %v663 = vunpack.c.l.b16 %v624
    %v664 = vunpack.c.l.b16 %v625
    %v665 = vunpack.c.l.b16 %v626
    %v666 = vunpack.c.l.b16 %v627
    %v667 = vunpack.c.l.b16 %v628
    %v668 = vunpack.c.l.b16 %v629
    %v669 = vpack.c.b16 %v654, %v653
    %v670 = vpack.c.b16 %v656, %v655
    %v671 = vpack.c.b16 %v658, %v657
    %v672 = vpack.c.b16 %v660, %v659
    %v673 = vpack.c.b16 %v662, %v661
    %v674 = vpack.c.b16 %v664, %v663
    %v675 = vpack.c.b16 %v666, %v665
    %v676 = vpack.c.b16 %v668, %v667
    %685 = vmatprep.subr.bf16.mxu0 0
    %686 = vmatpush1.bf16.msra.mxu0 %v669
    %687 = vmatprep.subr.bf16.mxu0 0
    %688 = vmatpush1.bf16.msra.mxu0 %v670
    %689 = vmatprep.subr.bf16.mxu0 0
    %690 = vmatpush1.bf16.msra.mxu0 %v671
    %691 = vmatprep.subr.bf16.mxu0 0
    %692 = vmatpush1.bf16.msra.mxu0 %v672
    %693 = vmatprep.subr.bf16.mxu0 0
    %694 = vmatpush1.bf16.msra.mxu0 %v673
    %695 = vmatprep.subr.bf16.mxu0 0
    %696 = vmatpush1.bf16.msra.mxu0 %v674
    %697 = vmatprep.subr.bf16.mxu0 0
    %698 = vmatpush1.bf16.msra.mxu0 %v675
    %699 = vmatprep.subr.bf16.mxu0 0
    %700 = vmatpush1.bf16.msra.mxu0 %v676
    %701 = vmatprep.subr.bf16.mxu0 0
    %702 = vmatpush1.bf16.msra.mxu0 0
    %703 = vmatprep.subr.bf16.mxu0 0
    %704 = vmatpush1.bf16.msra.mxu0 0
    %705 = vmatprep.subr.bf16.mxu0 0
    %706 = vmatpush1.bf16.msra.mxu0 0
    %707 = vmatprep.subr.bf16.mxu0 0
    %708 = vmatpush1.bf16.msra.mxu0 0
    %709 = vmatprep.subr.bf16.mxu0 0
    %710 = vmatpush1.bf16.msra.mxu0 0
    %711 = vmatprep.subr.bf16.mxu0 0
    %712 = vmatpush1.bf16.msra.mxu0 0
    %713 = vmatprep.subr.bf16.mxu0 0
    %714 = vmatpush1.bf16.msra.mxu0 0
    %715 = vmatprep.subr.bf16.mxu0 0
    %716 = vmatpush1.bf16.msra.mxu0 0
    %717 = vmatprep.mubr.bf16.mxu0 0
    %718 = vmatmul.mubr.bf16.gmra.mrb[0].mxu0 %v613
    %v719 = vpop.f32.mrb[0].mxu0
    %v720 = vadd.f32 %v635, %v719
    %v721 = vpop.f32.mrb[0].mxu0
    %v722 = vpop.f32.mrb[0].mxu0
    %v723 = vadd.f32 %v635, %v722
    %v724 = vpop.f32.mrb[0].mxu0
    %725 = vdwg.mxu0
    %726 = vst [vmem:[#allocation11] sm:$0xff] %v720
    %727 = vst [vmem:[#allocation11 + $0x8] sm:$0xff] %v723
    // Predicated region
    $region58: #{tpu_custom_call.1} parent=1 // pred_check
      _
    $region59: #{tpu_custom_call.1} parent=1 // pred_check_branch
      %729 = sbr.rel (0) target = $region61
    $region60: #{tpu_custom_call.1} parent=1 // pred_region
      %s731 = ssub.s32 256, 256
      %732 = vsyncadd [#allocation4], %s731
      %s733 = sshll.u32 [#allocation11], 4
      %s734 = int_to_ptr.vmem [resolvable:$true] %s733
      %739 = dma.vmem_to_hbm [thread:$0]  %s734, 256, %s9, [#allocation4], 128, 128, 8
    $region61: #{tpu_custom_call.1} parent=1 // pred_fallthru
      _
    // Predicated region
    $region62: #{tpu_custom_call.1} parent=1 // pred_check
      _
    $region63: #{tpu_custom_call.1} parent=1 // pred_check_branch
      %741 = sbr.rel (0) target = $region65
    $region64: #{tpu_custom_call.1} parent=1 // pred_region
      %742 = dma.done [#allocation4], 256
    $region65: #{tpu_custom_call.1} parent=1 // pred_fallthru
      _
    %743 = vsyncpa [#allocation3], 1
    %744 = vsyncpa [#allocation6], 1
    %745 = vsyncpa [#allocation9], 1
    %746 = vsyncpa [#allocation4], 1

</llo_original>
